<compile_context>
chip_gen: v6e
topology: v6e:2x2x1
jax: 0.10.0
libtpu: 0.0.40
codegen_flags: <defaults>
</compile_context>

<pallas_src>
import jax
import jax.numpy as jnp
from jax.experimental import pallas as pl
from jax.experimental.pallas import tpu as pltpu


def _channel_attention_kernel(x_ref, pool_ref, w1t_ref, w2t_ref, bcast_ref, o_ref):
    # x_ref, o_ref : (TB, C*L)  lane-dense blocks of the flattened input/output
    # pool_ref     : (C*L, C)   averages each channel's L lanes (entries 1/L)
    # w1t_ref      : (C, H)     W1 pre-transposed (H = C // reduction)
    # w2t_ref      : (H, C)     W2 pre-transposed
    # bcast_ref    : (C, C*L)   replicates each channel's gate across its L lanes
    x = x_ref[...]

    # Squeeze: global average pool over L, expressed as a matmul on the flat
    # layout (no in-kernel reshape / cross-lane reduction plumbing).
    pooled = jnp.dot(x, pool_ref[...], preferred_element_type=jnp.float32)      # (TB, C)

    # Excite: Linear -> ReLU -> Linear -> Sigmoid (bias-free), weights already
    # transposed so there is no per-iteration transpose inside the kernel.
    h = jnp.maximum(
        jnp.dot(pooled, w1t_ref[...], preferred_element_type=jnp.float32), 0.0)  # (TB, H)
    y = jax.nn.sigmoid(
        jnp.dot(h, w2t_ref[...], preferred_element_type=jnp.float32))            # (TB, C)

    # Scale: broadcast the per-channel gate over its L lanes via matmul, then a
    # single elementwise multiply -> full-width (unmasked) vector stores.
    scale = jnp.dot(y, bcast_ref[...], preferred_element_type=jnp.float32)       # (TB, C*L)
    o_ref[...] = (x * scale).astype(o_ref.dtype)


def _pick_block_b(B, C, L, itemsize, target_block_bytes=4 << 20):
    """Batch-tile size: big enough for DMA efficiency, small enough for v7x VMEM."""
    row_bytes = C * L * itemsize
    tb = max(1, target_block_bytes // row_bytes)
    # At least two grid steps when possible -> pipelining + both v7x TensorCores.
    tb = min(tb, pl.cdiv(B, 2))
    if tb >= B:
        return B
    # Keep the second-to-last block dim sublane-aligned (multiple of 8).
    tb = max(8, (tb // 8) * 8)
    return min(tb, B)


def channel_attention(x, w1, w2, *, block_b=None):
    """x: (B, C, L) f32; w1: (C//r, C); w2: (C, C//r) (PyTorch Linear layout)."""
    B, C, L = x.shape
    H = w1.shape[0]
    assert w1.shape == (H, C) and w2.shape == (C, H)
    itemsize = jnp.dtype(x.dtype).itemsize

    tb = block_b if block_b is not None else _pick_block_b(B, C, L, itemsize)
    grid = (pl.cdiv(B, tb),)

    # One-time layout prep outside the kernel (XLA ops, amortized once per call):
    #   - flatten to (B, C*L) so kernel I/O is lane-dense (C*L is a multiple of
    #     128 for realistic shapes; correctness holds regardless)
    #   - pre-transpose FC weights
    #   - constant pooling / broadcast matrices for the flat layout
    x2d = x.reshape(B, C * L)
    w1t = jnp.asarray(w1).T                                   # (C, H)
    w2t = jnp.asarray(w2).T                                   # (H, C)
    eye_c = jnp.eye(C, dtype=x.dtype)
    pool_mat = jnp.repeat(eye_c, L, axis=0) * (1.0 / L)       # (C*L, C)
    bcast_mat = jnp.repeat(eye_c, L, axis=1)                  # (C, C*L)

    # Explicit VMEM budget: double-buffered in+out blocks + resident constants.
    block_bytes = tb * C * L * itemsize
    aux_bytes = (C * L * C + 2 * C * H + C * C * L) * itemsize
    vmem_limit = 4 * block_bytes + 2 * aux_bytes + (4 << 20)
    vmem_limit = int(min(max(vmem_limit, 16 << 20), 56 << 20))  # stay inside v7x's 64 MiB

    # Advisory cost: mem-bound custom call (read x + write out dominate).
    cost = pl.CostEstimate(
        flops=int(4 * B * C * L * C + 4 * B * C * H + B * C * L),
        transcendentals=int(B * C),
        bytes_accessed=int((2 * B * C * L + C * L * C + 2 * C * H + C * C * L) * itemsize),
    )

    out2d = pl.pallas_call(
        _channel_attention_kernel,
        out_shape=jax.ShapeDtypeStruct((B, C * L), x.dtype),
        grid_spec=pltpu.PrefetchScalarGridSpec(
            num_scalar_prefetch=0,
            grid=grid,
            in_specs=[
                pl.BlockSpec((tb, C * L), lambda i: (i, 0)),   # x: streamed over batch tiles
                pl.BlockSpec((C * L, C), lambda i: (0, 0)),    # pool matrix (resident)
                pl.BlockSpec((C, H), lambda i: (0, 0)),        # W1^T (resident)
                pl.BlockSpec((H, C), lambda i: (0, 0)),        # W2^T (resident)
                pl.BlockSpec((C, C * L), lambda i: (0, 0)),    # broadcast matrix (resident)
            ],
            out_specs=pl.BlockSpec((tb, C * L), lambda i: (i, 0)),
        ),
        compiler_params=pltpu.CompilerParams(
            dimension_semantics=("parallel",),   # batch tiles independent -> megacore split
            vmem_limit_bytes=vmem_limit,
        ),
        cost_estimate=cost,
    )(x2d, pool_mat, w1t, w2t, bcast_mat)

    return out2d.reshape(B, C, L)


def channel_attention_ref(x, w1, w2):
    """Pure-JAX reference matching the PyTorch module."""
    pooled = jnp.mean(x, axis=-1)
    h = jnp.maximum(pooled @ w1.T, 0.0)
    y = jax.nn.sigmoid(h @ w2.T)
    return x * y[:, :, None]


if __name__ == "__main__":
    # Small shapes consistent with the module: channel=16, reduction=4, length=16.
    # Batch of 16 so the grid has >= 2 batch tiles (demonstrates pipelining /
    # megacore sharding) while staying tiny.
    B, C, L = 16, 16, 16
    reduction = 4
    H = C // reduction

    key = jax.random.PRNGKey(0)
    kx, k1, k2 = jax.random.split(key, 3)

    x = jax.random.normal(kx, (B, C, L), dtype=jnp.float32)
    # Deterministic synthetic weights (PyTorch Linear layout: (out, in)).
    w1 = jax.random.normal(k1, (H, C), dtype=jnp.float32) * 0.1
    w2 = jax.random.normal(k2, (C, H), dtype=jnp.float32) * 0.1

    out = channel_attention(x, w1, w2)
    out = jax.block_until_ready(out)

    ref = channel_attention_ref(x, w1, w2)
    assert out.shape == (B, C, L)
    assert jnp.allclose(out, ref, atol=1e-5, rtol=1e-5), "mismatch vs reference"

    print("KERNEL_OK")
</pallas_src>

<mosaic_0001>
module attributes {stable_mosaic.version = 11 : i64} {
  func.func @_channel_attention_kernel(%arg0: i32, %arg1: memref<8x256xf32, #tpu.memory_space<vmem>>, %arg2: memref<256x16xf32, #tpu.memory_space<vmem>>, %arg3: memref<16x4xf32, #tpu.memory_space<vmem>>, %arg4: memref<4x16xf32, #tpu.memory_space<vmem>>, %arg5: memref<16x256xf32, #tpu.memory_space<vmem>>, %arg6: memref<8x256xf32, #tpu.memory_space<vmem>>) attributes {dimension_semantics = [#tpu.dimension_semantics<parallel>], iteration_bounds = array<i64: 2>, scalar_prefetch = 0 : i64, scratch_operands = 0 : i64, tpu.core_type = #tpu.core_type<tc>, window_params = [{transform_indices = @transform_0, window_bounds = array<i64: 8, 256>}, {pipeline_mode = #tpu.pipeline_mode<synchronous>, transform_indices = @transform_1, window_bounds = array<i64: 256, 16>}, {pipeline_mode = #tpu.pipeline_mode<synchronous>, transform_indices = @transform_2, window_bounds = array<i64: 16, 4>}, {pipeline_mode = #tpu.pipeline_mode<synchronous>, transform_indices = @transform_3, window_bounds = array<i64: 4, 16>}, {pipeline_mode = #tpu.pipeline_mode<synchronous>, transform_indices = @transform_4, window_bounds = array<i64: 16, 256>}, {transform_indices = @transform_5, window_bounds = array<i64: 8, 256>}]} {
    %c0 = arith.constant 0 : index
    %c0_0 = arith.constant 0 : index
    %0 = vector.load %arg1[%c0, %c0_0] : memref<8x256xf32, #tpu.memory_space<vmem>>, vector<8x256xf32>
    %c0_1 = arith.constant 0 : index
    %c0_2 = arith.constant 0 : index
    %1 = vector.load %arg2[%c0_1, %c0_2] : memref<256x16xf32, #tpu.memory_space<vmem>>, vector<256x16xf32>
    %cst = arith.constant dense<0.000000e+00> : vector<8x16xf32>
    %2 = tpu.matmul %0, %1, %cst {dimension_numbers = #tpu.dot_dimension_numbers<[1], [0], [0], [1], [0, 0, 1, 1], [], []>} : vector<8x256xf32>, vector<256x16xf32>, vector<8x16xf32> -> vector<8x16xf32>
    %c0_3 = arith.constant 0 : index
    %c0_4 = arith.constant 0 : index
    %3 = vector.load %arg3[%c0_3, %c0_4] : memref<16x4xf32, #tpu.memory_space<vmem>>, vector<16x4xf32>
    %cst_5 = arith.constant dense<0.000000e+00> : vector<8x4xf32>
    %4 = tpu.matmul %2, %3, %cst_5 {dimension_numbers = #tpu.dot_dimension_numbers<[1], [0], [0], [1], [0, 0, 1, 1], [], []>} : vector<8x16xf32>, vector<16x4xf32>, vector<8x4xf32> -> vector<8x4xf32>
    %cst_6 = arith.constant 0.000000e+00 : f32
    %5 = vector.broadcast %cst_6 : f32 to vector<8x4xf32>
    %6 = arith.maximumf %4, %5 : vector<8x4xf32>
    %c0_7 = arith.constant 0 : index
    %c0_8 = arith.constant 0 : index
    %7 = vector.load %arg4[%c0_7, %c0_8] : memref<4x16xf32, #tpu.memory_space<vmem>>, vector<4x16xf32>
    %cst_9 = arith.constant dense<0.000000e+00> : vector<8x16xf32>
    %8 = tpu.matmul %6, %7, %cst_9 {dimension_numbers = #tpu.dot_dimension_numbers<[1], [0], [0], [1], [0, 0, 1, 1], [], []>} : vector<8x4xf32>, vector<4x16xf32>, vector<8x16xf32> -> vector<8x16xf32>
    %9 = arith.negf %8 : vector<8x16xf32>
    %10 = math.exp %9 : vector<8x16xf32>
    %cst_10 = arith.constant 1.000000e+00 : f32
    %11 = vector.broadcast %cst_10 : f32 to vector<8x16xf32>
    %12 = arith.addf %11, %10 : vector<8x16xf32>
    %13 = arith.divf %11, %12 : vector<8x16xf32>
    %c0_11 = arith.constant 0 : index
    %c0_12 = arith.constant 0 : index
    %14 = vector.load %arg5[%c0_11, %c0_12] : memref<16x256xf32, #tpu.memory_space<vmem>>, vector<16x256xf32>
    %cst_13 = arith.constant dense<0.000000e+00> : vector<8x256xf32>
    %15 = tpu.matmul %13, %14, %cst_13 {dimension_numbers = #tpu.dot_dimension_numbers<[1], [0], [0], [1], [0, 0, 1, 1], [], []>} : vector<8x16xf32>, vector<16x256xf32>, vector<8x256xf32> -> vector<8x256xf32>
    %16 = arith.mulf %0, %15 : vector<8x256xf32>
    %c0_14 = arith.constant 0 : index
    %c0_15 = arith.constant 0 : index
    %17 = vector.load %arg6[%c0_14, %c0_15] : memref<8x256xf32, #tpu.memory_space<vmem>>, vector<8x256xf32>
    tpu.vector_store %arg6[%c0_14, %c0_15], %16 {strides = array<i32>} : memref<8x256xf32, #tpu.memory_space<vmem>>, vector<8x256xf32>,
    return
  }
  func.func @transform_0(%arg0: i32) -> (i32, i32) {
    %c0_i32 = arith.constant 0 : i32
    %c0_i32_0 = arith.constant 0 : i32
    return %arg0, %c0_i32 : i32, i32
  }
  func.func @transform_1(%arg0: i32) -> (i32, i32) {
    %c0_i32 = arith.constant 0 : i32
    %c0_i32_0 = arith.constant 0 : i32
    %c0_i32_1 = arith.constant 0 : i32
    return %c0_i32, %c0_i32_0 : i32, i32
  }
  func.func @transform_2(%arg0: i32) -> (i32, i32) {
    %c0_i32 = arith.constant 0 : i32
    %c0_i32_0 = arith.constant 0 : i32
    %c0_i32_1 = arith.constant 0 : i32
    return %c0_i32, %c0_i32_0 : i32, i32
  }
  func.func @transform_3(%arg0: i32) -> (i32, i32) {
    %c0_i32 = arith.constant 0 : i32
    %c0_i32_0 = arith.constant 0 : i32
    %c0_i32_1 = arith.constant 0 : i32
    return %c0_i32, %c0_i32_0 : i32, i32
  }
  func.func @transform_4(%arg0: i32) -> (i32, i32) {
    %c0_i32 = arith.constant 0 : i32
    %c0_i32_0 = arith.constant 0 : i32
    %c0_i32_1 = arith.constant 0 : i32
    return %c0_i32, %c0_i32_0 : i32, i32
  }
  func.func @transform_5(%arg0: i32) -> (i32, i32) {
    %c0_i32 = arith.constant 0 : i32
    %c0_i32_0 = arith.constant 0 : i32
    return %arg0, %c0_i32 : i32, i32
  }
}

</mosaic_0001>

<llo_original>
// kernel: tpu_custom_call.1
$region0: #{tpu_custom_call.1}
  #allocation0 [shape = 'u32[]', space=smem, size = 0x4, offset = 0x4, fixed_abs, tag = 'smem constant byte address 0x4 - core index']
  #allocation1 [shape = 'u32[144,128]{1,0:T(1,128)}', space=vmem, size = 0x12000, scoped, tag = 'internal scratch']
  %s0 = inlined_call_operand.vmem [shape: f32[16,256], index: 0, kind: input, shape index: {}]
  %s1 = inlined_call_operand.vmem [shape: f32[256,16], index: 1, kind: input, shape index: {}]
  %s2 = inlined_call_operand.vmem [shape: f32[16,4], index: 2, kind: input, shape index: {}]
  %s3 = inlined_call_operand.vmem [shape: f32[4,16], index: 3, kind: input, shape index: {}]
  %s4 = inlined_call_operand.vmem [shape: f32[16,256], index: 4, kind: input, shape index: {}]
  %s5 = inlined_call_operand.hbm [shape: f32[16,256], index: 5, kind: output, shape index: {}]
  %s6 = sld [smem:[#allocation0]]
  $region53: #{tpu_custom_call.1} parent=0
    _
  %s8 = ssub.s32 1, %s6
  %s9 = scalar_select 0, %s8, %s6
  $region1: #{tpu_custom_call.1} parent=0
    #allocation2 [shape = 'u8[16384]{0}', space=vmem, size = 0x4000, scoped, tag = 'output window, operand 0']
    #allocation3 [shape = 's32[2]{0}', space=sflag, size = 0x8, scoped, tag = 'scoped memory for tpu_custom_call.1']
    %10 = vsyncpa [#allocation3], 0
    %s11 = scalar_lea.sflag [#allocation3], 1
    %12 = vsyncpa %s11, 0
    loop: start=0, step=1, limit=4
    $region2: #{tpu_custom_call.1} parent=1 // loop_pre_header
      _
    $region3: #{tpu_custom_call.1} parent=1 // loop_header
      %s14 = sphi 0, %s18
      %p15 = scmp.ge.s32.totalorder %s14, 4
      %s24 = sphi 0, %s26
      %s27 = sphi 0, %s24
      %s28 = sphi 0, %s27
      %s44 = sphi 0, %s28
      %s48 = sphi 0, %s48
      %s50 = sphi 0, %s48
      %s51 = sphi 0, %s50
      %s65 = sphi 0, %s51
      %s69 = sphi 0, %s69
      %s71 = sphi 0, %s69
      %s72 = sphi 0, %s71
      %s86 = sphi 0, %s72
      %s90 = sphi 0, %s90
      %s92 = sphi 0, %s90
      %s93 = sphi 0, %s92
      %s107 = sphi 0, %s93
      %s111 = sphi 0, %s111
      %s113 = sphi 0, %s111
      %s114 = sphi 0, %s113
      %s128 = sphi 0, %s114
      %s134 = sphi 0, %s136
      %s137 = sphi 0, %s134
      %s138 = sphi 0, %s137
      %s154 = sphi 0, %s138
    $region4: #{tpu_custom_call.1} parent=1 // loop_header_branch
      %17 = sbr.rel (%p15) target = $region8
    $region5: #{tpu_custom_call.1} parent=1 // loop_body
      %s19 = ssub.s32 %s14, 1
      %s20 = ssub.s32 %s14, 2
      %s21 = sadd.s32 %s14, 1
      %s22 = ssub.s32 %s14, %s21
      %p23 = scmp.eq.s32.totalorder %s22, 0
      %s25 = sadd.s32 %s24, 1
      %s26 = scalar_select %p23, %s24, %s25
      %p29 = pneg %p23
      %p30 = scmp.eq.s32.totalorder %s14, 1
      %p31 = por %p29, %p30
      %p32 = scmp.ne.s32.totalorder %s24, %s27
      %p33 = scmp.eq.s32.totalorder %s14, 0
      %p34 = por %p32, %p33
      %p35 = scmp.ne.s32.totalorder %s24, %s27
      %p36 = scmp.eq.s32.totalorder %s19, 1
      %p37 = por %p35, %p36
      %p38 = scmp.ne.s32.totalorder %s27, %s28
      %p39 = scmp.eq.s32.totalorder %s19, 0
      %p40 = por %p38, %p39
      %p41 = scmp.ne.s32.totalorder %s27, %s28
      %p42 = scmp.eq.s32.totalorder %s20, 1
      %p43 = por %p41, %p42
      %p45 = scmp.ne.s32.totalorder %s28, %s44
      %p46 = scmp.eq.s32.totalorder %s20, 0
      %p47 = por %p45, %p46
      %s49 = sadd.s32 %s48, 1
      %p52 = scmp.eq.s32.totalorder %s14, 1
      %p53 = scmp.ne.s32.totalorder %s48, %s50
      %p54 = scmp.eq.s32.totalorder %s14, 0
      %p55 = por %p53, %p54
      %p56 = scmp.ne.s32.totalorder %s48, %s50
      %p57 = scmp.eq.s32.totalorder %s19, 1
      %p58 = por %p56, %p57
      %p59 = scmp.ne.s32.totalorder %s50, %s51
      %p60 = scmp.eq.s32.totalorder %s19, 0
      %p61 = por %p59, %p60
      %p62 = scmp.ne.s32.totalorder %s50, %s51
      %p63 = scmp.eq.s32.totalorder %s20, 1
      %p64 = por %p62, %p63
      %p66 = scmp.ne.s32.totalorder %s51, %s65
      %p67 = scmp.eq.s32.totalorder %s20, 0
      %p68 = por %p66, %p67
      %s70 = sadd.s32 %s69, 1
      %p73 = scmp.eq.s32.totalorder %s14, 1
      %p74 = scmp.ne.s32.totalorder %s69, %s71
      %p75 = scmp.eq.s32.totalorder %s14, 0
      %p76 = por %p74, %p75
      %p77 = scmp.ne.s32.totalorder %s69, %s71
      %p78 = scmp.eq.s32.totalorder %s19, 1
      %p79 = por %p77, %p78
      %p80 = scmp.ne.s32.totalorder %s71, %s72
      %p81 = scmp.eq.s32.totalorder %s19, 0
      %p82 = por %p80, %p81
      %p83 = scmp.ne.s32.totalorder %s71, %s72
      %p84 = scmp.eq.s32.totalorder %s20, 1
      %p85 = por %p83, %p84
      %p87 = scmp.ne.s32.totalorder %s72, %s86
      %p88 = scmp.eq.s32.totalorder %s20, 0
      %p89 = por %p87, %p88
      %s91 = sadd.s32 %s90, 1
      %p94 = scmp.eq.s32.totalorder %s14, 1
      %p95 = scmp.ne.s32.totalorder %s90, %s92
      %p96 = scmp.eq.s32.totalorder %s14, 0
      %p97 = por %p95, %p96
      %p98 = scmp.ne.s32.totalorder %s90, %s92
      %p99 = scmp.eq.s32.totalorder %s19, 1
      %p100 = por %p98, %p99
      %p101 = scmp.ne.s32.totalorder %s92, %s93
      %p102 = scmp.eq.s32.totalorder %s19, 0
      %p103 = por %p101, %p102
      %p104 = scmp.ne.s32.totalorder %s92, %s93
      %p105 = scmp.eq.s32.totalorder %s20, 1
      %p106 = por %p104, %p105
      %p108 = scmp.ne.s32.totalorder %s93, %s107
      %p109 = scmp.eq.s32.totalorder %s20, 0
      %p110 = por %p108, %p109
      %s112 = sadd.s32 %s111, 1
      %p115 = scmp.eq.s32.totalorder %s14, 1
      %p116 = scmp.ne.s32.totalorder %s111, %s113
      %p117 = scmp.eq.s32.totalorder %s14, 0
      %p118 = por %p116, %p117
      %p119 = scmp.ne.s32.totalorder %s111, %s113
      %p120 = scmp.eq.s32.totalorder %s19, 1
      %p121 = por %p119, %p120
      %p122 = scmp.ne.s32.totalorder %s113, %s114
      %p123 = scmp.eq.s32.totalorder %s19, 0
      %p124 = por %p122, %p123
      %p125 = scmp.ne.s32.totalorder %s113, %s114
      %p126 = scmp.eq.s32.totalorder %s20, 1
      %p127 = por %p125, %p126
      %p129 = scmp.ne.s32.totalorder %s114, %s128
      %p130 = scmp.eq.s32.totalorder %s20, 0
      %p131 = por %p129, %p130
      %s132 = ssub.s32 %s14, %s21
      %p133 = scmp.eq.s32.totalorder %s132, 0
      %s135 = sadd.s32 %s134, 1
      %s136 = scalar_select %p133, %s134, %s135
      %p139 = pneg %p133
      %p140 = scmp.eq.s32.totalorder %s14, 1
      %p141 = por %p139, %p140
      %p142 = scmp.ne.s32.totalorder %s134, %s137
      %p143 = scmp.eq.s32.totalorder %s14, 0
      %p144 = por %p142, %p143
      %p145 = scmp.ne.s32.totalorder %s134, %s137
      %p146 = scmp.eq.s32.totalorder %s19, 1
      %p147 = por %p145, %p146
      %p148 = scmp.ne.s32.totalorder %s137, %s138
      %p149 = scmp.eq.s32.totalorder %s19, 0
      %p150 = por %p148, %p149
      %p151 = scmp.ne.s32.totalorder %s137, %s138
      %p152 = scmp.eq.s32.totalorder %s20, 1
      %p153 = por %p151, %p152
      %p155 = scmp.ne.s32.totalorder %s138, %s154
      %p156 = scmp.eq.s32.totalorder %s20, 0
      %p157 = por %p155, %p156
      %p158 = scmp.le.s32.totalorder 1, %s14
      %p159 = scmp.lt.s32.totalorder %s14, 3
      %p160 = pnand %p158, %p159
      %p161 = pneg %p160
      // Predicated region
      $region9: #{tpu_custom_call.1} parent=5 // pred_check
        _
      $region10: #{tpu_custom_call.1} parent=5 // pred_check_branch
        %163 = sbr.rel (%p160) target = $region12
      $region11: #{tpu_custom_call.1} parent=5 // pred_region
        %s164 = ssub.s32 %s14, 1
        // Predicated region
        $region13: #{tpu_custom_call.1} parent=11 // pred_check
          %p165 = pneg %p61
        $region14: #{tpu_custom_call.1} parent=11 // pred_check_branch
          %167 = sbr.rel (%p165) target = $region16
        $region15: #{tpu_custom_call.1} parent=11 // pred_region
          _
        $region16: #{tpu_custom_call.1} parent=11 // pred_fallthru
          _
        // Predicated region
        $region17: #{tpu_custom_call.1} parent=11 // pred_check
          %p168 = pneg %p82
        $region18: #{tpu_custom_call.1} parent=11 // pred_check_branch
          %170 = sbr.rel (%p168) target = $region20
        $region19: #{tpu_custom_call.1} parent=11 // pred_region
          _
        $region20: #{tpu_custom_call.1} parent=11 // pred_fallthru
          _
        // Predicated region
        $region21: #{tpu_custom_call.1} parent=11 // pred_check
          %p171 = pneg %p103
        $region22: #{tpu_custom_call.1} parent=11 // pred_check_branch
          %173 = sbr.rel (%p171) target = $region24
        $region23: #{tpu_custom_call.1} parent=11 // pred_region
          _
        $region24: #{tpu_custom_call.1} parent=11 // pred_fallthru
          _
        // Predicated region
        $region25: #{tpu_custom_call.1} parent=11 // pred_check
          %p174 = pneg %p124
        $region26: #{tpu_custom_call.1} parent=11 // pred_check_branch
          %176 = sbr.rel (%p174) target = $region28
        $region27: #{tpu_custom_call.1} parent=11 // pred_region
          _
        $region28: #{tpu_custom_call.1} parent=11 // pred_fallthru
          _
      $region12: #{tpu_custom_call.1} parent=5 // pred_fallthru
        _
      %p177 = scmp.lt.s32.totalorder %s14, 2
      // Predicated region
      $region29: #{tpu_custom_call.1} parent=5 // pred_check
        %p178 = pneg %p177
      $region30: #{tpu_custom_call.1} parent=5 // pred_check_branch
        %180 = sbr.rel (%p178) target = $region32
      $region31: #{tpu_custom_call.1} parent=5 // pred_region
        // Predicated region
        $region33: #{tpu_custom_call.1} parent=31 // pred_check
          %p181 = pneg %p34
        $region34: #{tpu_custom_call.1} parent=31 // pred_check_branch
          %183 = sbr.rel (%p181) target = $region36
        $region35: #{tpu_custom_call.1} parent=31 // pred_region
          %p184 = scmp.lt.s32.totalorder %s14, 1
          %s185 = scalar_select %p184, %s14, 1
          %s186 = smul.addr %s185, 2
          %s187 = smul.addr %s186, 8
          %s188 = scalar_lea.vmem %s0, %s187
        $region36: #{tpu_custom_call.1} parent=31 // pred_fallthru
          _
      $region32: #{tpu_custom_call.1} parent=5 // pred_fallthru
        _
      %p189 = scmp.le.s32.totalorder 1, %s14
      %p190 = scmp.lt.s32.totalorder %s14, 3
      %p191 = pnand %p189, %p190
      %p192 = pneg %p191
      // Predicated region
      $region37: #{tpu_custom_call.1} parent=5 // pred_check
        _
      $region38: #{tpu_custom_call.1} parent=5 // pred_check_branch
        %194 = sbr.rel (%p191) target = $region40
      $region39: #{tpu_custom_call.1} parent=5 // pred_region
        %s195 = ssub.s32 %s14, 1
        %p196 = scmp.lt.s32.totalorder %s19, 1
        %s197 = scalar_select %p196, %s19, 1
        %s198 = smul.addr %s197, 2
        %s199 = smul.addr %s198, 8
        %s200 = scalar_lea.vmem %s0, %s199
        %p201 = pneg %p40
        %p202 = pneg %p37
        %p203 = pneg %p61
        %p204 = pneg %p58
        %p205 = pneg %p82
        %p206 = pneg %p79
        %p207 = pneg %p103
        %p208 = pneg %p100
        %p209 = pneg %p124
        %p210 = pneg %p121
        %p211 = pneg %p150
        %p212 = pneg %p147
        %s213 = sand.u32 %s137, 1
        %s214 = scalar_lea.sflag [#allocation3], %s213
        %s215 = sand.u32 %s137, 1
        %s216 = smul.addr %s215, 16
        %s217 = scalar_lea.vmem [#allocation2], %s216
        %p218 = scmp.lt.s32.totalorder %s19, 1
        %s219 = scalar_select %p218, %s19, 1
        %s220 = smul.addr %s219, 2
        %s221 = smul.addr %s220, 8
        %s222 = scalar_lea.vmem %s0, %s221
        %v223 = vld [vmem:[%s222] sm:$0xff]
        %v224 = vld [vmem:[%s222 + $0x8] sm:$0xff]
        %v225 = vld [vmem:[%s1] sm:$0xff]
        %v226 = vld [vmem:[%s1 + $0x8] sm:$0xff]
        %v227 = vld [vmem:[%s1 + $0x10] sm:$0xff]
        %v228 = vld [vmem:[%s1 + $0x18] sm:$0xff]
        %v229 = vld [vmem:[%s1 + $0x20] sm:$0xff]
        %v230 = vld [vmem:[%s1 + $0x28] sm:$0xff]
        %v231 = vld [vmem:[%s1 + $0x30] sm:$0xff]
        %v232 = vld [vmem:[%s1 + $0x38] sm:$0xff]
        %v233 = vld [vmem:[%s1 + $0x40] sm:$0xff]
        %v234 = vld [vmem:[%s1 + $0x48] sm:$0xff]
        %v235 = vld [vmem:[%s1 + $0x50] sm:$0xff]
        %v236 = vld [vmem:[%s1 + $0x58] sm:$0xff]
        %v237 = vld [vmem:[%s1 + $0x60] sm:$0xff]
        %v238 = vld [vmem:[%s1 + $0x68] sm:$0xff]
        %v239 = vld [vmem:[%s1 + $0x70] sm:$0xff]
        %v240 = vld [vmem:[%s1 + $0x78] sm:$0xff]
        %v241 = vld [vmem:[%s1 + $0x80] sm:$0xff]
        %v242 = vld [vmem:[%s1 + $0x88] sm:$0xff]
        %v243 = vld [vmem:[%s1 + $0x90] sm:$0xff]
        %v244 = vld [vmem:[%s1 + $0x98] sm:$0xff]
        %v245 = vld [vmem:[%s1 + $0xa0] sm:$0xff]
        %v246 = vld [vmem:[%s1 + $0xa8] sm:$0xff]
        %v247 = vld [vmem:[%s1 + $0xb0] sm:$0xff]
        %v248 = vld [vmem:[%s1 + $0xb8] sm:$0xff]
        %v249 = vld [vmem:[%s1 + $0xc0] sm:$0xff]
        %v250 = vld [vmem:[%s1 + $0xc8] sm:$0xff]
        %v251 = vld [vmem:[%s1 + $0xd0] sm:$0xff]
        %v252 = vld [vmem:[%s1 + $0xd8] sm:$0xff]
        %v253 = vld [vmem:[%s1 + $0xe0] sm:$0xff]
        %v254 = vld [vmem:[%s1 + $0xe8] sm:$0xff]
        %v255 = vld [vmem:[%s1 + $0xf0] sm:$0xff]
        %v256 = vld [vmem:[%s1 + $0xf8] sm:$0xff]
        %257 = vmatprep.subr.mxu0 0.0
        %258 = vmatpush1.msra.mxu0 %v240
        %259 = vmatprep.subr.mxu0 0.0
        %260 = vmatpush1.msra.mxu0 %v239
        %261 = vmatprep.subr.mxu0 0.0
        %262 = vmatpush1.msra.mxu0 %v238
        %263 = vmatprep.subr.mxu0 0.0
        %264 = vmatpush1.msra.mxu0 %v237
        %265 = vmatprep.subr.mxu0 0.0
        %266 = vmatpush1.msra.mxu0 %v236
        %267 = vmatprep.subr.mxu0 0.0
        %268 = vmatpush1.msra.mxu0 %v235
        %269 = vmatprep.subr.mxu0 0.0
        %270 = vmatpush1.msra.mxu0 %v234
        %271 = vmatprep.subr.mxu0 0.0
        %272 = vmatpush1.msra.mxu0 %v233
        %273 = vmatprep.subr.mxu0 0.0
        %274 = vmatpush1.msra.mxu0 %v232
        %275 = vmatprep.subr.mxu0 0.0
        %276 = vmatpush1.msra.mxu0 %v231
        %277 = vmatprep.subr.mxu0 0.0
        %278 = vmatpush1.msra.mxu0 %v230
        %279 = vmatprep.subr.mxu0 0.0
        %280 = vmatpush1.msra.mxu0 %v229
        %281 = vmatprep.subr.mxu0 0.0
        %282 = vmatpush1.msra.mxu0 %v228
        %283 = vmatprep.subr.mxu0 0.0
        %284 = vmatpush1.msra.mxu0 %v227
        %285 = vmatprep.subr.mxu0 0.0
        %286 = vmatpush1.msra.mxu0 %v226
        %287 = vmatprep.subr.mxu0 0.0
        %288 = vmatpush1.msra.mxu0 %v225
        %289 = vmatprep.subr.mxu0 0.0
        %290 = vmatpush2.msra.mxu0 %v256
        %291 = vmatprep.subr.mxu0 0.0
        %292 = vmatpush2.msra.mxu0 %v255
        %293 = vmatprep.subr.mxu0 0.0
        %294 = vmatpush2.msra.mxu0 %v254
        %295 = vmatprep.subr.mxu0 0.0
        %296 = vmatpush2.msra.mxu0 %v253
        %297 = vmatprep.subr.mxu0 0.0
        %298 = vmatpush2.msra.mxu0 %v252
        %299 = vmatprep.subr.mxu0 0.0
        %300 = vmatpush2.msra.mxu0 %v251
        %301 = vmatprep.subr.mxu0 0.0
        %302 = vmatpush2.msra.mxu0 %v250
        %303 = vmatprep.subr.mxu0 0.0
        %304 = vmatpush2.msra.mxu0 %v249
        %305 = vmatprep.subr.mxu0 0.0
        %306 = vmatpush2.msra.mxu0 %v248
        %307 = vmatprep.subr.mxu0 0.0
        %308 = vmatpush2.msra.mxu0 %v247
        %309 = vmatprep.subr.mxu0 0.0
        %310 = vmatpush2.msra.mxu0 %v246
        %311 = vmatprep.subr.mxu0 0.0
        %312 = vmatpush2.msra.mxu0 %v245
        %313 = vmatprep.subr.mxu0 0.0
        %314 = vmatpush2.msra.mxu0 %v244
        %315 = vmatprep.subr.mxu0 0.0
        %316 = vmatpush2.msra.mxu0 %v243
        %317 = vmatprep.subr.mxu0 0.0
        %318 = vmatpush2.msra.mxu0 %v242
        %319 = vmatprep.subr.mxu0 0.0
        %320 = vmatpush2.msra.mxu0 %v241
        %321 = vmatprep.mubr.f32.mxu0 %v224
        %322 = vmatmul.mubr.f32.gmra.mxu0 %v223
        %v323 = vpop.f32.mrf.mxu0
        %v324 = vadd.f32 0.0, %v323
        %v325 = vpop.f32.mrf.mxu0
        %326 = vdwg.mxu0
        %v327 = vld [vmem:[%s2] sm:$0xff]
        %v328 = vld [vmem:[%s2 + $0x8] sm:$0xff]
        %vm329 = vcmask 130048
        %v331 = vsel %vm329, %v324, 0
        %333 = vmatprep.subr.mxu0 0.0
        %334 = vmatpush1.msra.mxu0 0.0
        %335 = vmatprep.subr.mxu0 0.0
        %336 = vmatpush1.msra.mxu0 0.0
        %337 = vmatprep.subr.mxu0 0.0
        %338 = vmatpush1.msra.mxu0 0.0
        %339 = vmatprep.subr.mxu0 0.0
        %340 = vmatpush1.msra.mxu0 0.0
        %341 = vmatprep.subr.mxu0 0.0
        %342 = vmatpush1.msra.mxu0 0.0
        %343 = vmatprep.subr.mxu0 0.0
        %344 = vmatpush1.msra.mxu0 0.0
        %345 = vmatprep.subr.mxu0 0.0
        %346 = vmatpush1.msra.mxu0 0.0
        %347 = vmatprep.subr.mxu0 0.0
        %348 = vmatpush1.msra.mxu0 0.0
        %349 = vmatprep.subr.mxu0 0.0
        %350 = vmatpush1.msra.mxu0 0.0
        %351 = vmatprep.subr.mxu0 0.0
        %352 = vmatpush1.msra.mxu0 0.0
        %353 = vmatprep.subr.mxu0 0.0
        %354 = vmatpush1.msra.mxu0 0.0
        %355 = vmatprep.subr.mxu0 0.0
        %356 = vmatpush1.msra.mxu0 0.0
        %357 = vmatprep.subr.mxu0 0.0
        %358 = vmatpush1.msra.mxu0 0.0
        %359 = vmatprep.subr.mxu0 0.0
        %360 = vmatpush1.msra.mxu0 0.0
        %361 = vmatprep.subr.mxu0 0.0
        %362 = vmatpush1.msra.mxu0 %v328
        %363 = vmatprep.subr.mxu0 0.0
        %364 = vmatpush1.msra.mxu0 %v327
        %365 = vmatprep.subr.mxu0 0.0
        %366 = vmatpush2.msra.mxu0 0.0
        %367 = vmatprep.subr.mxu0 0.0
        %368 = vmatpush2.msra.mxu0 0.0
        %369 = vmatprep.subr.mxu0 0.0
        %370 = vmatpush2.msra.mxu0 0.0
        %371 = vmatprep.subr.mxu0 0.0
        %372 = vmatpush2.msra.mxu0 0.0
        %373 = vmatprep.subr.mxu0 0.0
        %374 = vmatpush2.msra.mxu0 0.0
        %375 = vmatprep.subr.mxu0 0.0
        %376 = vmatpush2.msra.mxu0 0.0
        %377 = vmatprep.subr.mxu0 0.0
        %378 = vmatpush2.msra.mxu0 0.0
        %379 = vmatprep.subr.mxu0 0.0
        %380 = vmatpush2.msra.mxu0 0.0
        %381 = vmatprep.subr.mxu0 0.0
        %382 = vmatpush2.msra.mxu0 0.0
        %383 = vmatprep.subr.mxu0 0.0
        %384 = vmatpush2.msra.mxu0 0.0
        %385 = vmatprep.subr.mxu0 0.0
        %386 = vmatpush2.msra.mxu0 0.0
        %387 = vmatprep.subr.mxu0 0.0
        %388 = vmatpush2.msra.mxu0 0.0
        %389 = vmatprep.subr.mxu0 0.0
        %390 = vmatpush2.msra.mxu0 0.0
        %391 = vmatprep.subr.mxu0 0.0
        %392 = vmatpush2.msra.mxu0 0.0
        %393 = vmatprep.subr.mxu0 0.0
        %394 = vmatpush2.msra.mxu0 0.0
        %395 = vmatprep.subr.mxu0 0.0
        %396 = vmatpush2.msra.mxu0 0.0
        %397 = vmatprep.mubr.f32.mxu0 0.0
        %398 = vmatmul.mubr.f32.gmra.mxu0 %v331
        %v399 = vpop.f32.mrf.mxu0
        %v400 = vadd.f32 0.0, %v399
        %v401 = vpop.f32.mrf.mxu0
        %402 = vdwg.mxu0
        %v403 = vmax.f32 %v400, 0.0
        %v404 = vld [vmem:[%s3] sm:$0xf]
        %vm405 = vcmask 31744
        %v407 = vsel %vm405, %v403, 0
        %vm409 = vcmask 1043456
        %v411 = vsel %vm409, %v404, 0
        %413 = vmatprep.subr.mxu0 0.0
        %414 = vmatpush1.msra.mxu0 0.0
        %415 = vmatprep.subr.mxu0 0.0
        %416 = vmatpush1.msra.mxu0 0.0
        %417 = vmatprep.subr.mxu0 0.0
        %418 = vmatpush1.msra.mxu0 0.0
        %419 = vmatprep.subr.mxu0 0.0
        %420 = vmatpush1.msra.mxu0 0.0
        %421 = vmatprep.subr.mxu0 0.0
        %422 = vmatpush1.msra.mxu0 0.0
        %423 = vmatprep.subr.mxu0 0.0
        %424 = vmatpush1.msra.mxu0 0.0
        %425 = vmatprep.subr.mxu0 0.0
        %426 = vmatpush1.msra.mxu0 0.0
        %427 = vmatprep.subr.mxu0 0.0
        %428 = vmatpush1.msra.mxu0 0.0
        %429 = vmatprep.subr.mxu0 0.0
        %430 = vmatpush1.msra.mxu0 0.0
        %431 = vmatprep.subr.mxu0 0.0
        %432 = vmatpush1.msra.mxu0 0.0
        %433 = vmatprep.subr.mxu0 0.0
        %434 = vmatpush1.msra.mxu0 0.0
        %435 = vmatprep.subr.mxu0 0.0
        %436 = vmatpush1.msra.mxu0 0.0
        %437 = vmatprep.subr.mxu0 0.0
        %438 = vmatpush1.msra.mxu0 0.0
        %439 = vmatprep.subr.mxu0 0.0
        %440 = vmatpush1.msra.mxu0 0.0
        %441 = vmatprep.subr.mxu0 0.0
        %442 = vmatpush1.msra.mxu0 0.0
        %443 = vmatprep.subr.mxu0 0.0
        %444 = vmatpush1.msra.mxu0 %v411
        %445 = vmatprep.subr.mxu0 0.0
        %446 = vmatpush2.msra.mxu0 0.0
        %447 = vmatprep.subr.mxu0 0.0
        %448 = vmatpush2.msra.mxu0 0.0
        %449 = vmatprep.subr.mxu0 0.0
        %450 = vmatpush2.msra.mxu0 0.0
        %451 = vmatprep.subr.mxu0 0.0
        %452 = vmatpush2.msra.mxu0 0.0
        %453 = vmatprep.subr.mxu0 0.0
        %454 = vmatpush2.msra.mxu0 0.0
        %455 = vmatprep.subr.mxu0 0.0
        %456 = vmatpush2.msra.mxu0 0.0
        %457 = vmatprep.subr.mxu0 0.0
        %458 = vmatpush2.msra.mxu0 0.0
        %459 = vmatprep.subr.mxu0 0.0
        %460 = vmatpush2.msra.mxu0 0.0
        %461 = vmatprep.subr.mxu0 0.0
        %462 = vmatpush2.msra.mxu0 0.0
        %463 = vmatprep.subr.mxu0 0.0
        %464 = vmatpush2.msra.mxu0 0.0
        %465 = vmatprep.subr.mxu0 0.0
        %466 = vmatpush2.msra.mxu0 0.0
        %467 = vmatprep.subr.mxu0 0.0
        %468 = vmatpush2.msra.mxu0 0.0
        %469 = vmatprep.subr.mxu0 0.0
        %470 = vmatpush2.msra.mxu0 0.0
        %471 = vmatprep.subr.mxu0 0.0
        %472 = vmatpush2.msra.mxu0 0.0
        %473 = vmatprep.subr.mxu0 0.0
        %474 = vmatpush2.msra.mxu0 0.0
        %475 = vmatprep.subr.mxu0 0.0
        %476 = vmatpush2.msra.mxu0 0.0
        %477 = vmatprep.mubr.f32.mxu0 0.0
        %478 = vmatmul.mubr.f32.gmra.mxu0 %v407
        %v479 = vpop.f32.mrf.mxu0
        %v480 = vadd.f32 0.0, %v479
        %v481 = vpop.f32.mrf.mxu0
        %482 = vdwg.mxu0
        %v483 = vxor.u32 %v480, 2147483648
        %v484 = vmul.f32 %v483, 1.442695
        %v485 = vpow.pop %v484
        %v486 = vadd.f32 %v485, 1.0
        %v487 = vrcp.pop %v486
        %v488 = vmul.f32 1.0, %v487
        %v489 = vld [vmem:[%s4] sm:$0xff]
        %v490 = vld [vmem:[%s4 + $0x8] sm:$0xff]
        %v491 = vld [vmem:[%s4 + $0x10] sm:$0xff]
        %v492 = vld [vmem:[%s4 + $0x18] sm:$0xff]
        %v494 = vsel %vm329, %v488, 0
        %496 = vmatprep.subr.mxu0 0.0
        %497 = vmatpush1.msra.mxu0 0.0
        %498 = vmatprep.subr.mxu0 0.0
        %499 = vmatpush1.msra.mxu0 0.0
        %500 = vmatprep.subr.mxu0 0.0
        %501 = vmatpush1.msra.mxu0 0.0
        %502 = vmatprep.subr.mxu0 0.0
        %503 = vmatpush1.msra.mxu0 0.0
        %504 = vmatprep.subr.mxu0 0.0
        %505 = vmatpush1.msra.mxu0 0.0
        %506 = vmatprep.subr.mxu0 0.0
        %507 = vmatpush1.msra.mxu0 0.0
        %508 = vmatprep.subr.mxu0 0.0
        %509 = vmatpush1.msra.mxu0 0.0
        %510 = vmatprep.subr.mxu0 0.0
        %511 = vmatpush1.msra.mxu0 0.0
        %512 = vmatprep.subr.mxu0 0.0
        %513 = vmatpush1.msra.mxu0 0.0
        %514 = vmatprep.subr.mxu0 0.0
        %515 = vmatpush1.msra.mxu0 0.0
        %516 = vmatprep.subr.mxu0 0.0
        %517 = vmatpush1.msra.mxu0 0.0
        %518 = vmatprep.subr.mxu0 0.0
        %519 = vmatpush1.msra.mxu0 0.0
        %520 = vmatprep.subr.mxu0 0.0
        %521 = vmatpush1.msra.mxu0 0.0
        %522 = vmatprep.subr.mxu0 0.0
        %523 = vmatpush1.msra.mxu0 0.0
        %524 = vmatprep.subr.mxu0 %v492
        %525 = vmatpush1.msra.mxu0 %v491
        %526 = vmatprep.subr.mxu0 %v490
        %527 = vmatpush1.msra.mxu0 %v489
        %528 = vmatprep.subr.mxu0 0.0
        %529 = vmatpush2.msra.mxu0 0.0
        %530 = vmatprep.subr.mxu0 0.0
        %531 = vmatpush2.msra.mxu0 0.0
        %532 = vmatprep.subr.mxu0 0.0
        %533 = vmatpush2.msra.mxu0 0.0
        %534 = vmatprep.subr.mxu0 0.0
        %535 = vmatpush2.msra.mxu0 0.0
        %536 = vmatprep.subr.mxu0 0.0
        %537 = vmatpush2.msra.mxu0 0.0
        %538 = vmatprep.subr.mxu0 0.0
        %539 = vmatpush2.msra.mxu0 0.0
        %540 = vmatprep.subr.mxu0 0.0
        %541 = vmatpush2.msra.mxu0 0.0
        %542 = vmatprep.subr.mxu0 0.0
        %543 = vmatpush2.msra.mxu0 0.0
        %544 = vmatprep.subr.mxu0 0.0
        %545 = vmatpush2.msra.mxu0 0.0
        %546 = vmatprep.subr.mxu0 0.0
        %547 = vmatpush2.msra.mxu0 0.0
        %548 = vmatprep.subr.mxu0 0.0
        %549 = vmatpush2.msra.mxu0 0.0
        %550 = vmatprep.subr.mxu0 0.0
        %551 = vmatpush2.msra.mxu0 0.0
        %552 = vmatprep.subr.mxu0 0.0
        %553 = vmatpush2.msra.mxu0 0.0
        %554 = vmatprep.subr.mxu0 0.0
        %555 = vmatpush2.msra.mxu0 0.0
        %556 = vmatprep.subr.mxu0 0.0
        %557 = vmatpush2.msra.mxu0 0.0
        %558 = vmatprep.subr.mxu0 0.0
        %559 = vmatpush2.msra.mxu0 0.0
        %560 = vmatprep.mubr.f32.mxu0 0.0
        %561 = vmatmul.mubr.f32.gmra.mxu0 %v494
        %v562 = vpop.f32.mrf.mxu0
        %v563 = vadd.f32 0.0, %v562
        %v564 = vpop.f32.mrf.mxu0
        %v565 = vadd.f32 0.0, %v564
        %566 = vdwg.mxu0
        %v567 = vmul.f32 %v223, %v563
        %v568 = vmul.f32 %v224, %v565
        %569 = vst [vmem:[%s217] sm:$0xff] %v567
        %570 = vst [vmem:[%s217 + $0x8] sm:$0xff] %v568
        %s571 = sand.u32 %s137, 1
        %s572 = scalar_lea.sflag [#allocation3], %s571
        %s573 = sand.u32 %s137, 1
        %s574 = smul.addr %s573, 16
        %s575 = scalar_lea.vmem [#allocation2], %s574
        // Predicated region
        $region41: #{tpu_custom_call.1} parent=39 // pred_check
          %p576 = pneg %p147
        $region42: #{tpu_custom_call.1} parent=39 // pred_check_branch
          %578 = sbr.rel (%p576) target = $region44
        $region43: #{tpu_custom_call.1} parent=39 // pred_region
          %s580 = ssub.s32 256, 256
          %581 = vsyncadd %s572, %s580
          %s582 = smul.addr %s19, 2
          %s583 = smul.addr %s582, 128
          %s584 = scalar_lea.hbm %s5, %s583
          %s586 = sshll.u32 %s575, 4
          %s587 = int_to_ptr.vmem [resolvable:$true] %s586
          %589 = dma.vmem_to_hbm [thread:$0]  %s587, 256, %s584, %s572
        $region44: #{tpu_custom_call.1} parent=39 // pred_fallthru
          _
      $region40: #{tpu_custom_call.1} parent=5 // pred_fallthru
        _
      %p590 = scmp.le.s32.totalorder 2, %s14
      // Predicated region
      $region45: #{tpu_custom_call.1} parent=5 // pred_check
        %p591 = pneg %p590
      $region46: #{tpu_custom_call.1} parent=5 // pred_check_branch
        %593 = sbr.rel (%p591) target = $region48
      $region47: #{tpu_custom_call.1} parent=5 // pred_region
        %s594 = ssub.s32 %s14, 2
        // Predicated region
        $region49: #{tpu_custom_call.1} parent=47 // pred_check
          %p595 = pneg %p153
        $region50: #{tpu_custom_call.1} parent=47 // pred_check_branch
          %597 = sbr.rel (%p595) target = $region52
        $region51: #{tpu_custom_call.1} parent=47 // pred_region
          %s598 = sand.u32 %s138, 1
          %s599 = scalar_lea.sflag [#allocation3], %s598
          %s600 = sand.u32 %s138, 1
          %s601 = smul.addr %s600, 16
          %s602 = scalar_lea.vmem [#allocation2], %s601
          %603 = dma.done %s599, 256
        $region52: #{tpu_custom_call.1} parent=47 // pred_fallthru
          _
      $region48: #{tpu_custom_call.1} parent=5 // pred_fallthru
        _
    $region6: #{tpu_custom_call.1} parent=1 // loop_footer
      %s18 = sadd.s32 1, %s14
    $region7: #{tpu_custom_call.1} parent=1 // loop_footer_branch
      %13 = sbr.rel target = $region3
    $region8: #{tpu_custom_call.1} parent=1 // loop_exit
      _
    %604 = vsyncpa [#allocation3], 1
    %s605 = scalar_lea.sflag [#allocation3], 1
    %606 = vsyncpa %s605, 1

</llo_original>
